<compile_context>
chip_gen: v6e
topology: v6e:2x2x1
jax: 0.10.0
libtpu: 0.0.40
codegen_flags: <defaults>
</compile_context>

<pallas_src>
import math
import numpy as np

import jax
import jax.numpy as jnp
from jax import lax
from jax.experimental import pallas as pl
from jax.experimental.pallas import tpu as pltpu

EPS = 1e-5


def preact_block(x_nchw, g1, b1, w1_hwio, g2, b2, w2_hwio, *, mxu_dtype=jnp.float32):
    """x_nchw: (N, Cin, H, W); conv weights in HWIO (3, 3, Cin, Cout).

    mxu_dtype: dtype of the conv-matmul operands (band weights + activation
    slab fed to the MXU).  Keep f32 on v5e; bf16 recommended on v6e/v7x.
    BN statistics and all elementwise math stay f32 regardless.
    """
    N, Cin, H, W = x_nchw.shape
    Cout = w1_hwio.shape[-1]
    assert Cin == Cout, "identity-shortcut configuration only"
    # TODO(synk): 1x1 strided shortcut conv path (stride != 1 or in_planes != planes)
    #             is not exercised at these shapes and is not implemented here.
    C = Cin

    # Pad channels so the lane dim L = W * Cp is a multiple of 128 (full vregs,
    # unmasked output stores, full MXU column occupancy).
    if (W * C) % 128 == 0:
        Cp = C
    else:
        m = 128 // math.gcd(W, 128)
        Cp = ((C + m - 1) // m) * m
    cpad = Cp - C

    R = N * H                  # rows  = (n, y)
    L = W * Cp                 # lanes = (x, c)
    inv_count = 1.0 / float(N * H * W)   # elements per (real) channel for BN stats

    f32 = jnp.float32

    # ---- lane-dense activation slab: (N*H, W*Cp), f32 -----------------------
    x_nhwc = jnp.transpose(x_nchw, (0, 2, 3, 1)).astype(f32)
    if cpad:
        x_nhwc = jnp.pad(x_nhwc, ((0, 0), (0, 0), (0, 0), (0, cpad)))
    x_flat = x_nhwc.reshape(R, L)

    # ---- structural constants (weight-independent, built once) --------------
    lane = np.arange(L)
    # P[i, j] = 1 iff lanes i, j hold the same channel: folds the W lane groups
    # into per-channel stats AND broadcasts them back in one matmul.  Padded
    # channels only fold with themselves (their stats stay zero).
    P = (lane[:, None] % Cp == lane[None, :] % Cp).astype(np.float32)        # (L, L)
    # Horizontal-tap selector: Msel[kx, xw, x] = 1 iff xw == x + kx - 1.
    kxs = np.arange(3)
    xw = np.arange(W)
    xx = np.arange(W)
    Msel = (xw[None, :, None] == (xx[None, None, :] + kxs[:, None, None] - 1)
            ).astype(np.float32)                                             # (3, W, W)

    def pad_c(v):
        v = v.astype(f32)
        return jnp.pad(v, (0, cpad)) if cpad else v

    def pad_w(w):
        w = w.astype(f32)
        return jnp.pad(w, ((0, 0), (0, 0), (0, cpad), (0, cpad))) if cpad else w

    def band(w_hwio_arr):
        # Banded weight slab: wb[ky, xw*Cp+ci, x*Cp+co] = w[ky, xw-x+1, ci, co]
        # (zero outside the 3-tap band => horizontal 'SAME' padding for free).
        # The 3 vertical taps are stacked along K so each conv is ONE matmul.
        # TODO(synk): band density is 3/W, i.e. ~W/3x extra MXU FLOPs; tile the
        #             x dimension (narrower W per band) or switch to lane-rolled
        #             per-tap (Cin,Cout) weights once this becomes the compute
        #             ceiling at production widths.
        wb = jnp.einsum('dwx,ydio->ywixo', Msel, pad_w(w_hwio_arr))
        return wb.reshape(3 * L, L).astype(mxu_dtype)                        # (3L, L)

    w1b = band(w1_hwio)
    w2b = band(w2_hwio)
    # BN affine params pre-tiled to the lane layout (x, c); pad lanes get 0.
    g1l = jnp.tile(pad_c(g1), W).reshape(1, L)
    b1l = jnp.tile(pad_c(b1), W).reshape(1, L)
    g2l = jnp.tile(pad_c(g2), W).reshape(1, L)
    b2l = jnp.tile(pad_c(b2), W).reshape(1, L)

    def kernel(x_ref, p_ref, g1_ref, b1_ref, w1_ref, g2_ref, b2_ref, w2_ref, o_ref):
        x = x_ref[...]
        p = p_ref[...]

        # Image-boundary row masks for the vertical taps (rows = (n, y)).
        rows = lax.broadcasted_iota(jnp.int32, (R, L), 0)
        top = (rows % H) == 0          # y == 0     : no y-1 neighbour
        bot = (rows % H) == (H - 1)    # y == H - 1 : no y+1 neighbour

        def bn_relu(a, g, b):
            # Reduce rows FIRST (cheap sublane reduce), then fold/broadcast the
            # per-channel stats with tiny (1,L)x(L,L) matmuls.  All f32.
            s1 = jnp.sum(a, axis=0, keepdims=True)                           # sum x
            s2 = jnp.sum(a * a, axis=0, keepdims=True)                       # sum x^2
            mean = jnp.dot(s1, p, preferred_element_type=f32) * inv_count
            e2 = jnp.dot(s2, p, preferred_element_type=f32) * inv_count
            var = e2 - mean * mean                                           # biased var
            scale = g * lax.rsqrt(var + EPS)
            shift = b - mean * scale
            return jnp.maximum(a * scale + shift, 0.0)

        def conv3x3(a, w_ref_):
            # Vertical taps + vertical zero-pad: roll +/- one row (XLU) and mask
            # rows that crossed an image boundary (VPU).  Horizontal taps +
            # horizontal zero-pad are pre-folded into the banded weights, so the
            # whole 3x3 conv is a single (R, 3L) x (3L, L) MXU matmul.
            a_up = jnp.where(top, 0.0, pltpu.roll(a, shift=1, axis=0))       # a[r-1]
            a_dn = jnp.where(bot, 0.0, pltpu.roll(a, shift=R - 1, axis=0))   # a[r+1]
            a_cat = jnp.concatenate([a_up, a, a_dn], axis=-1).astype(w_ref_.dtype)
            return jnp.dot(a_cat, w_ref_[...], preferred_element_type=f32)

        out1 = bn_relu(x, g1_ref[...], b1_ref[...])
        c1 = conv3x3(out1, w1_ref)
        out2 = bn_relu(c1, g2_ref[...], b2_ref[...])
        c2 = conv3x3(out2, w2_ref)
        o_ref[...] = (c2 + x).astype(o_ref.dtype)        # identity shortcut

    # TODO(synk): for production ResNet shapes, add a row-block grid marked
    #             "parallel" (uses both v7x TensorCores) with a two-pass BN-stats
    #             reduction, bf16 band weights, an explicit VMEM budget
    #             (vmem_limit_bytes) and a CostEstimate.  At this toy size the
    #             single-invocation kernel is the right shape (launch-bound).
    vmem = pl.BlockSpec(memory_space=pltpu.MemorySpace.VMEM)
    out_flat = pl.pallas_call(
        kernel,
        out_shape=jax.ShapeDtypeStruct((R, L), jnp.float32),
        in_specs=[vmem] * 8,
        out_specs=vmem,
    )(x_flat, jnp.asarray(P), g1l, b1l, w1b, g2l, b2l, w2b)

    # Wrapper-side layout plumbing back to NCHW (drop the pad channels).
    out_nhwc = out_flat.reshape(N, H, W, Cp)[..., :C]
    return jnp.transpose(out_nhwc, (0, 3, 1, 2))


def reference(x, g1, b1, w1_hwio, g2, b2, w2_hwio):
    """Pure-JAX reference of the PyTorch forward (NCHW, train-mode BN)."""
    def bn(y, g, b):
        mean = jnp.mean(y, axis=(0, 2, 3), keepdims=True)
        var = jnp.mean(jnp.square(y - mean), axis=(0, 2, 3), keepdims=True)
        return (y - mean) * lax.rsqrt(var + EPS) * g.reshape(1, -1, 1, 1) \
            + b.reshape(1, -1, 1, 1)

    dn = ('NCHW', 'HWIO', 'NCHW')
    out = jax.nn.relu(bn(x, g1, b1))
    shortcut = x
    out = lax.conv_general_dilated(out, w1_hwio, (1, 1), 'SAME', dimension_numbers=dn)
    out = jax.nn.relu(bn(out, g2, b2))
    out = lax.conv_general_dilated(out, w2_hwio, (1, 1), 'SAME', dimension_numbers=dn)
    return out + shortcut


if __name__ == "__main__":
    key = jax.random.PRNGKey(0)
    ks = jax.random.split(key, 7)

    N, C, H, W = 2, 4, 16, 16          # in_planes = planes = 4, stride = 1
    x = jax.random.normal(ks[0], (N, C, H, W), jnp.float32)
    g1 = 1.0 + 0.1 * jax.random.normal(ks[1], (C,), jnp.float32)
    b1 = 0.1 * jax.random.normal(ks[2], (C,), jnp.float32)
    w1 = 0.2 * jax.random.normal(ks[3], (3, 3, C, C), jnp.float32)   # HWIO
    g2 = 1.0 + 0.1 * jax.random.normal(ks[4], (C,), jnp.float32)
    b2 = 0.1 * jax.random.normal(ks[5], (C,), jnp.float32)
    w2 = 0.2 * jax.random.normal(ks[6], (3, 3, C, C), jnp.float32)   # HWIO

    out = jax.block_until_ready(preact_block(x, g1, b1, w1, g2, b2, w2))
    ref = jax.block_until_ready(reference(x, g1, b1, w1, g2, b2, w2))

    assert out.shape == (N, C, H, W)
    max_err = float(jnp.max(jnp.abs(out - ref)))
    assert max_err < 1e-2, f"mismatch vs reference: {max_err}"
    print("KERNEL_OK")
</pallas_src>

<mosaic_0001>
module attributes {stable_mosaic.version = 11 : i64} {
  func.func @kernel(%arg0: memref<32x128xf32, #tpu.memory_space<vmem>>, %arg1: memref<128x128xf32, #tpu.memory_space<vmem>>, %arg2: memref<1x128xf32, #tpu.memory_space<vmem>>, %arg3: memref<1x128xf32, #tpu.memory_space<vmem>>, %arg4: memref<384x128xf32, #tpu.memory_space<vmem>>, %arg5: memref<1x128xf32, #tpu.memory_space<vmem>>, %arg6: memref<1x128xf32, #tpu.memory_space<vmem>>, %arg7: memref<384x128xf32, #tpu.memory_space<vmem>>, %arg8: memref<32x128xf32, #tpu.memory_space<vmem>>) attributes {dimension_semantics = [], scalar_prefetch = 0 : i64, scratch_operands = 0 : i64, tpu.core_type = #tpu.core_type<tc>} {
    %c0 = arith.constant 0 : index
    %c0_0 = arith.constant 0 : index
    %0 = vector.load %arg0[%c0, %c0_0] : memref<32x128xf32, #tpu.memory_space<vmem>>, vector<32x128xf32>
    %c0_1 = arith.constant 0 : index
    %c0_2 = arith.constant 0 : index
    %1 = vector.load %arg1[%c0_1, %c0_2] : memref<128x128xf32, #tpu.memory_space<vmem>>, vector<128x128xf32>
    %2 = tpu.iota {dimensions = array<i32: 0>} : vector<32x128xi32>
    %c16_i32 = arith.constant 16 : i32
    %c0_i32 = arith.constant 0 : i32
    %3 = arith.cmpi eq, %c16_i32, %c0_i32 : i32
    %c1_i32 = arith.constant 1 : i32
    %4 = arith.select %3, %c1_i32, %c16_i32 : i32
    %5 = vector.broadcast %4 : i32 to vector<32x128xi32>
    %6 = arith.remsi %2, %5 : vector<32x128xi32>
    %c0_i32_3 = arith.constant 0 : i32
    %7 = vector.broadcast %c0_i32_3 : i32 to vector<32x128xi32>
    %8 = arith.cmpi ne, %6, %7 : vector<32x128xi32>
    %c0_i32_4 = arith.constant 0 : i32
    %9 = vector.broadcast %c0_i32_4 : i32 to vector<32x128xi32>
    %10 = arith.cmpi slt, %6, %9 : vector<32x128xi32>
    %c0_i32_5 = arith.constant 0 : i32
    %11 = arith.cmpi slt, %4, %c0_i32_5 : i32
    %12 = vector.broadcast %11 : i1 to vector<32x128xi1>
    %13 = vector.broadcast %12 : vector<32x128xi1> to vector<32x128xi1>
    %14 = arith.xori %10, %13 : vector<32x128xi1>
    %15 = arith.andi %14, %8 : vector<32x128xi1>
    %16 = vector.broadcast %4 : i32 to vector<32x128xi32>
    %17 = arith.addi %6, %16 : vector<32x128xi32>
    %18 = arith.select %15, %17, %6 : vector<32x128xi1>, vector<32x128xi32>
    %c0_i32_6 = arith.constant 0 : i32
    %19 = vector.broadcast %c0_i32_6 : i32 to vector<32x128xi32>
    %20 = arith.cmpi eq, %18, %19 : vector<32x128xi32>
    %c16_i32_7 = arith.constant 16 : i32
    %c0_i32_8 = arith.constant 0 : i32
    %21 = arith.cmpi eq, %c16_i32_7, %c0_i32_8 : i32
    %c1_i32_9 = arith.constant 1 : i32
    %22 = arith.select %21, %c1_i32_9, %c16_i32_7 : i32
    %23 = vector.broadcast %22 : i32 to vector<32x128xi32>
    %24 = arith.remsi %2, %23 : vector<32x128xi32>
    %c0_i32_10 = arith.constant 0 : i32
    %25 = vector.broadcast %c0_i32_10 : i32 to vector<32x128xi32>
    %26 = arith.cmpi ne, %24, %25 : vector<32x128xi32>
    %c0_i32_11 = arith.constant 0 : i32
    %27 = vector.broadcast %c0_i32_11 : i32 to vector<32x128xi32>
    %28 = arith.cmpi slt, %24, %27 : vector<32x128xi32>
    %c0_i32_12 = arith.constant 0 : i32
    %29 = arith.cmpi slt, %22, %c0_i32_12 : i32
    %30 = vector.broadcast %29 : i1 to vector<32x128xi1>
    %31 = vector.broadcast %30 : vector<32x128xi1> to vector<32x128xi1>
    %32 = arith.xori %28, %31 : vector<32x128xi1>
    %33 = arith.andi %32, %26 : vector<32x128xi1>
    %34 = vector.broadcast %22 : i32 to vector<32x128xi32>
    %35 = arith.addi %24, %34 : vector<32x128xi32>
    %36 = arith.select %33, %35, %24 : vector<32x128xi1>, vector<32x128xi32>
    %c15_i32 = arith.constant 15 : i32
    %37 = vector.broadcast %c15_i32 : i32 to vector<32x128xi32>
    %38 = arith.cmpi eq, %36, %37 : vector<32x128xi32>
    %c0_13 = arith.constant 0 : index
    %c0_14 = arith.constant 0 : index
    %39 = vector.load %arg2[%c0_13, %c0_14] : memref<1x128xf32, #tpu.memory_space<vmem>>, vector<1x128xf32>
    %c0_15 = arith.constant 0 : index
    %c0_16 = arith.constant 0 : index
    %40 = vector.load %arg3[%c0_15, %c0_16] : memref<1x128xf32, #tpu.memory_space<vmem>>, vector<1x128xf32>
    %cst = arith.constant dense<0.000000e+00> : vector<128xf32>
    %41 = vector.multi_reduction <add>, %0, %cst [0] : vector<32x128xf32> to vector<128xf32>
    %42 = vector.shape_cast %41 : vector<128xf32> to vector<1x128xf32>
    %43 = arith.mulf %0, %0 : vector<32x128xf32>
    %cst_17 = arith.constant dense<0.000000e+00> : vector<128xf32>
    %44 = vector.multi_reduction <add>, %43, %cst_17 [0] : vector<32x128xf32> to vector<128xf32>
    %45 = vector.shape_cast %44 : vector<128xf32> to vector<1x128xf32>
    %cst_18 = arith.constant dense<0.000000e+00> : vector<1x128xf32>
    %46 = tpu.matmul %42, %1, %cst_18 {dimension_numbers = #tpu.dot_dimension_numbers<[1], [0], [0], [1], [0, 0, 1, 1], [], []>} : vector<1x128xf32>, vector<128x128xf32>, vector<1x128xf32> -> vector<1x128xf32>
    %cst_19 = arith.constant 0.001953125 : f32
    %47 = vector.broadcast %cst_19 : f32 to vector<1x128xf32>
    %48 = arith.mulf %46, %47 : vector<1x128xf32>
    %cst_20 = arith.constant dense<0.000000e+00> : vector<1x128xf32>
    %49 = tpu.matmul %45, %1, %cst_20 {dimension_numbers = #tpu.dot_dimension_numbers<[1], [0], [0], [1], [0, 0, 1, 1], [], []>} : vector<1x128xf32>, vector<128x128xf32>, vector<1x128xf32> -> vector<1x128xf32>
    %cst_21 = arith.constant 0.001953125 : f32
    %50 = vector.broadcast %cst_21 : f32 to vector<1x128xf32>
    %51 = arith.mulf %49, %50 : vector<1x128xf32>
    %52 = arith.mulf %48, %48 : vector<1x128xf32>
    %53 = arith.subf %51, %52 : vector<1x128xf32>
    %cst_22 = arith.constant 9.99999974E-6 : f32
    %54 = vector.broadcast %cst_22 : f32 to vector<1x128xf32>
    %55 = arith.addf %53, %54 : vector<1x128xf32>
    %56 = math.rsqrt %55 : vector<1x128xf32>
    %57 = arith.mulf %39, %56 : vector<1x128xf32>
    %58 = arith.mulf %48, %57 : vector<1x128xf32>
    %59 = arith.subf %40, %58 : vector<1x128xf32>
    %60 = vector.broadcast %57 : vector<1x128xf32> to vector<32x128xf32>
    %61 = arith.mulf %0, %60 : vector<32x128xf32>
    %62 = vector.broadcast %59 : vector<1x128xf32> to vector<32x128xf32>
    %63 = arith.addf %61, %62 : vector<32x128xf32>
    %cst_23 = arith.constant 0.000000e+00 : f32
    %64 = vector.broadcast %cst_23 : f32 to vector<32x128xf32>
    %65 = arith.maximumf %63, %64 : vector<32x128xf32>
    %c1_i32_24 = arith.constant 1 : i32
    %66 = tpu.dynamic_rotate %65 by %c1_i32_24 dim 0 : vector<32x128xf32>, i32 -> vector<32x128xf32>
    %cst_25 = arith.constant 0.000000e+00 : f32
    %67 = vector.broadcast %cst_25 : f32 to vector<32x128xf32>
    %68 = arith.select %20, %67, %66 : vector<32x128xi1>, vector<32x128xf32>
    %c31_i32 = arith.constant 31 : i32
    %69 = tpu.dynamic_rotate %65 by %c31_i32 dim 0 : vector<32x128xf32>, i32 -> vector<32x128xf32>
    %cst_26 = arith.constant 0.000000e+00 : f32
    %70 = vector.broadcast %cst_26 : f32 to vector<32x128xf32>
    %71 = arith.select %38, %70, %69 : vector<32x128xi1>, vector<32x128xf32>
    %72 = tpu.concatenate %68, %65, %71 in 1 : vector<32x128xf32>, vector<32x128xf32>, vector<32x128xf32> -> vector<32x384xf32>
    %c0_27 = arith.constant 0 : index
    %c0_28 = arith.constant 0 : index
    %73 = vector.load %arg4[%c0_27, %c0_28] : memref<384x128xf32, #tpu.memory_space<vmem>>, vector<384x128xf32>
    %cst_29 = arith.constant dense<0.000000e+00> : vector<32x128xf32>
    %74 = tpu.matmul %72, %73, %cst_29 {dimension_numbers = #tpu.dot_dimension_numbers<[1], [0], [0], [1], [0, 0, 1, 1], [], []>} : vector<32x384xf32>, vector<384x128xf32>, vector<32x128xf32> -> vector<32x128xf32>
    %c0_30 = arith.constant 0 : index
    %c0_31 = arith.constant 0 : index
    %75 = vector.load %arg5[%c0_30, %c0_31] : memref<1x128xf32, #tpu.memory_space<vmem>>, vector<1x128xf32>
    %c0_32 = arith.constant 0 : index
    %c0_33 = arith.constant 0 : index
    %76 = vector.load %arg6[%c0_32, %c0_33] : memref<1x128xf32, #tpu.memory_space<vmem>>, vector<1x128xf32>
    %cst_34 = arith.constant dense<0.000000e+00> : vector<128xf32>
    %77 = vector.multi_reduction <add>, %74, %cst_34 [0] : vector<32x128xf32> to vector<128xf32>
    %78 = vector.shape_cast %77 : vector<128xf32> to vector<1x128xf32>
    %79 = arith.mulf %74, %74 : vector<32x128xf32>
    %cst_35 = arith.constant dense<0.000000e+00> : vector<128xf32>
    %80 = vector.multi_reduction <add>, %79, %cst_35 [0] : vector<32x128xf32> to vector<128xf32>
    %81 = vector.shape_cast %80 : vector<128xf32> to vector<1x128xf32>
    %cst_36 = arith.constant dense<0.000000e+00> : vector<1x128xf32>
    %82 = tpu.matmul %78, %1, %cst_36 {dimension_numbers = #tpu.dot_dimension_numbers<[1], [0], [0], [1], [0, 0, 1, 1], [], []>} : vector<1x128xf32>, vector<128x128xf32>, vector<1x128xf32> -> vector<1x128xf32>
    %cst_37 = arith.constant 0.001953125 : f32
    %83 = vector.broadcast %cst_37 : f32 to vector<1x128xf32>
    %84 = arith.mulf %82, %83 : vector<1x128xf32>
    %cst_38 = arith.constant dense<0.000000e+00> : vector<1x128xf32>
    %85 = tpu.matmul %81, %1, %cst_38 {dimension_numbers = #tpu.dot_dimension_numbers<[1], [0], [0], [1], [0, 0, 1, 1], [], []>} : vector<1x128xf32>, vector<128x128xf32>, vector<1x128xf32> -> vector<1x128xf32>
    %cst_39 = arith.constant 0.001953125 : f32
    %86 = vector.broadcast %cst_39 : f32 to vector<1x128xf32>
    %87 = arith.mulf %85, %86 : vector<1x128xf32>
    %88 = arith.mulf %84, %84 : vector<1x128xf32>
    %89 = arith.subf %87, %88 : vector<1x128xf32>
    %cst_40 = arith.constant 9.99999974E-6 : f32
    %90 = vector.broadcast %cst_40 : f32 to vector<1x128xf32>
    %91 = arith.addf %89, %90 : vector<1x128xf32>
    %92 = math.rsqrt %91 : vector<1x128xf32>
    %93 = arith.mulf %75, %92 : vector<1x128xf32>
    %94 = arith.mulf %84, %93 : vector<1x128xf32>
    %95 = arith.subf %76, %94 : vector<1x128xf32>
    %96 = vector.broadcast %93 : vector<1x128xf32> to vector<32x128xf32>
    %97 = arith.mulf %74, %96 : vector<32x128xf32>
    %98 = vector.broadcast %95 : vector<1x128xf32> to vector<32x128xf32>
    %99 = arith.addf %97, %98 : vector<32x128xf32>
    %cst_41 = arith.constant 0.000000e+00 : f32
    %100 = vector.broadcast %cst_41 : f32 to vector<32x128xf32>
    %101 = arith.maximumf %99, %100 : vector<32x128xf32>
    %c1_i32_42 = arith.constant 1 : i32
    %102 = tpu.dynamic_rotate %101 by %c1_i32_42 dim 0 : vector<32x128xf32>, i32 -> vector<32x128xf32>
    %cst_43 = arith.constant 0.000000e+00 : f32
    %103 = vector.broadcast %cst_43 : f32 to vector<32x128xf32>
    %104 = arith.select %20, %103, %102 : vector<32x128xi1>, vector<32x128xf32>
    %c31_i32_44 = arith.constant 31 : i32
    %105 = tpu.dynamic_rotate %101 by %c31_i32_44 dim 0 : vector<32x128xf32>, i32 -> vector<32x128xf32>
    %cst_45 = arith.constant 0.000000e+00 : f32
    %106 = vector.broadcast %cst_45 : f32 to vector<32x128xf32>
    %107 = arith.select %38, %106, %105 : vector<32x128xi1>, vector<32x128xf32>
    %108 = tpu.concatenate %104, %101, %107 in 1 : vector<32x128xf32>, vector<32x128xf32>, vector<32x128xf32> -> vector<32x384xf32>
    %c0_46 = arith.constant 0 : index
    %c0_47 = arith.constant 0 : index
    %109 = vector.load %arg7[%c0_46, %c0_47] : memref<384x128xf32, #tpu.memory_space<vmem>>, vector<384x128xf32>
    %cst_48 = arith.constant dense<0.000000e+00> : vector<32x128xf32>
    %110 = tpu.matmul %108, %109, %cst_48 {dimension_numbers = #tpu.dot_dimension_numbers<[1], [0], [0], [1], [0, 0, 1, 1], [], []>} : vector<32x384xf32>, vector<384x128xf32>, vector<32x128xf32> -> vector<32x128xf32>
    %111 = arith.addf %110, %0 : vector<32x128xf32>
    %c0_49 = arith.constant 0 : index
    %c0_50 = arith.constant 0 : index
    %112 = vector.load %arg8[%c0_49, %c0_50] : memref<32x128xf32, #tpu.memory_space<vmem>>, vector<32x128xf32>
    tpu.vector_store %arg8[%c0_49, %c0_50], %111 {strides = array<i32>} : memref<32x128xf32, #tpu.memory_space<vmem>>, vector<32x128xf32>,
    return
  }
}

</mosaic_0001>

<llo_original>
// kernel: tpu_custom_call.1
$region0: #{tpu_custom_call.1}
  #allocation0 [shape = 'u32[]', space=smem, size = 0x4, offset = 0x4, fixed_abs, tag = 'smem constant byte address 0x4 - core index']
  #allocation1 [shape = 'u32[144,128]{1,0:T(1,128)}', space=vmem, size = 0x12000, scoped, tag = 'internal scratch']
  %s0 = inlined_call_operand.hbm [shape: f32[32,128], index: 0, kind: input, shape index: {}]
  %s1 = inlined_call_operand.hbm [shape: f32[128,128], index: 1, kind: input, shape index: {}]
  %s2 = inlined_call_operand.vmem [shape: f32[1,128], index: 2, kind: input, shape index: {}]
  %s3 = inlined_call_operand.vmem [shape: f32[1,128], index: 3, kind: input, shape index: {}]
  %s4 = inlined_call_operand.hbm [shape: f32[384,128], index: 4, kind: input, shape index: {}]
  %s5 = inlined_call_operand.vmem [shape: f32[1,128], index: 5, kind: input, shape index: {}]
  %s6 = inlined_call_operand.vmem [shape: f32[1,128], index: 6, kind: input, shape index: {}]
  %s7 = inlined_call_operand.hbm [shape: f32[384,128], index: 7, kind: input, shape index: {}]
  %s8 = inlined_call_operand.hbm [shape: f32[32,128], index: 8, kind: output, shape index: {}]
  %s9 = sld [smem:[#allocation0]]
  $region58: #{tpu_custom_call.1} parent=0
    _
  %s11 = ssub.s32 1, %s9
  %s12 = scalar_select 0, %s11, %s9
  $region1: #{tpu_custom_call.1} parent=0
    #allocation2 [shape = 'u8[16384]{0}', space=vmem, size = 0x4000, scoped, tag = 'input window, operand 0, single buffered']
    #allocation3 [shape = 's32[1]{0}', space=sflag, size = 0x4, scoped, tag = 'scoped memory for tpu_custom_call.1']
    #allocation4 [shape = 's32[1]{0}', space=sflag, size = 0x4, scoped, tag = 'scoped memory for tpu_custom_call.1']
    #allocation5 [shape = 'u8[65536]{0}', space=vmem, size = 0x10000, scoped, tag = 'input window, operand 1, single buffered']
    #allocation6 [shape = 's32[1]{0}', space=sflag, size = 0x4, scoped, tag = 'scoped memory for tpu_custom_call.1']
    #allocation7 [shape = 'u8[196608]{0}', space=vmem, size = 0x30000, scoped, tag = 'input window, operand 4, single buffered']
    #allocation8 [shape = 'u8[196608]{0}', space=vmem, size = 0x30000, scoped, tag = 'input window, operand 7, single buffered']
    #allocation9 [shape = 's32[1]{0}', space=sflag, size = 0x4, scoped, tag = 'scoped memory for tpu_custom_call.1']
    #allocation10 [shape = 'u8[16384]{0}', space=vmem, size = 0x4000, scoped, tag = 'output window, operand 0, single buffered']
    %13 = vsyncpa [#allocation3], 0
    %14 = vsyncpa [#allocation6], 0
    %15 = vsyncpa [#allocation9], 0
    %16 = vsyncpa [#allocation4], 0
    // Predicated region
    $region2: #{tpu_custom_call.1} parent=1 // pred_check
      _
    $region3: #{tpu_custom_call.1} parent=1 // pred_check_branch
      %18 = sbr.rel (0) target = $region5
    $region4: #{tpu_custom_call.1} parent=1 // pred_region
      %s20 = ssub.s32 512, 512
      %21 = vsyncadd [#allocation3], %s20
      %s22 = sshll.u32 [#allocation2], 4
      %s23 = int_to_ptr.vmem [resolvable:$true] %s22
      %28 = dma.hbm_to_vmem [thread:$0]  %s0, 512, %s23, [#allocation3], 128, 128, 8
    $region5: #{tpu_custom_call.1} parent=1 // pred_fallthru
      _
    // Predicated region
    $region6: #{tpu_custom_call.1} parent=1 // pred_check
      _
    $region7: #{tpu_custom_call.1} parent=1 // pred_check_branch
      %30 = sbr.rel (0) target = $region9
    $region8: #{tpu_custom_call.1} parent=1 // pred_region
      %s32 = ssub.s32 2048, 2048
      %33 = vsyncadd [#allocation6], %s32
      %s34 = sshll.u32 [#allocation5], 4
      %s35 = int_to_ptr.vmem [resolvable:$true] %s34
      %40 = dma.hbm_to_vmem [thread:$0]  %s1, 2048, %s35, [#allocation6], 128, 128, 8
    $region9: #{tpu_custom_call.1} parent=1 // pred_fallthru
      _
    // Predicated region
    $region10: #{tpu_custom_call.1} parent=1 // pred_check
      _
    $region11: #{tpu_custom_call.1} parent=1 // pred_check_branch
      %42 = sbr.rel (0) target = $region13
    $region12: #{tpu_custom_call.1} parent=1 // pred_region
      _
    $region13: #{tpu_custom_call.1} parent=1 // pred_fallthru
      _
    // Predicated region
    $region14: #{tpu_custom_call.1} parent=1 // pred_check
      _
    $region15: #{tpu_custom_call.1} parent=1 // pred_check_branch
      %44 = sbr.rel (0) target = $region17
    $region16: #{tpu_custom_call.1} parent=1 // pred_region
      _
    $region17: #{tpu_custom_call.1} parent=1 // pred_fallthru
      _
    // Predicated region
    $region18: #{tpu_custom_call.1} parent=1 // pred_check
      _
    $region19: #{tpu_custom_call.1} parent=1 // pred_check_branch
      %46 = sbr.rel (0) target = $region21
    $region20: #{tpu_custom_call.1} parent=1 // pred_region
      %s48 = ssub.s32 6144, 6144
      %49 = vsyncadd [#allocation6], %s48
      %s50 = sshll.u32 [#allocation7], 4
      %s51 = int_to_ptr.vmem [resolvable:$true] %s50
      %56 = dma.hbm_to_vmem [thread:$0]  %s4, 6144, %s51, [#allocation6], 128, 128, 8
    $region21: #{tpu_custom_call.1} parent=1 // pred_fallthru
      _
    // Predicated region
    $region22: #{tpu_custom_call.1} parent=1 // pred_check
      _
    $region23: #{tpu_custom_call.1} parent=1 // pred_check_branch
      %58 = sbr.rel (0) target = $region25
    $region24: #{tpu_custom_call.1} parent=1 // pred_region
      _
    $region25: #{tpu_custom_call.1} parent=1 // pred_fallthru
      _
    // Predicated region
    $region26: #{tpu_custom_call.1} parent=1 // pred_check
      _
    $region27: #{tpu_custom_call.1} parent=1 // pred_check_branch
      %60 = sbr.rel (0) target = $region29
    $region28: #{tpu_custom_call.1} parent=1 // pred_region
      _
    $region29: #{tpu_custom_call.1} parent=1 // pred_fallthru
      _
    // Predicated region
    $region30: #{tpu_custom_call.1} parent=1 // pred_check
      _
    $region31: #{tpu_custom_call.1} parent=1 // pred_check_branch
      %62 = sbr.rel (0) target = $region33
    $region32: #{tpu_custom_call.1} parent=1 // pred_region
      %s64 = ssub.s32 6144, 6144
      %65 = vsyncadd [#allocation9], %s64
      %s66 = sshll.u32 [#allocation8], 4
      %s67 = int_to_ptr.vmem [resolvable:$true] %s66
      %72 = dma.hbm_to_vmem [thread:$0]  %s7, 6144, %s67, [#allocation9], 128, 128, 8
    $region33: #{tpu_custom_call.1} parent=1 // pred_fallthru
      _
    // Predicated region
    $region34: #{tpu_custom_call.1} parent=1 // pred_check
      _
    $region35: #{tpu_custom_call.1} parent=1 // pred_check_branch
      %74 = sbr.rel (0) target = $region37
    $region36: #{tpu_custom_call.1} parent=1 // pred_region
      %75 = dma.done [#allocation3], 512
    $region37: #{tpu_custom_call.1} parent=1 // pred_fallthru
      _
    // Predicated region
    $region38: #{tpu_custom_call.1} parent=1 // pred_check
      _
    $region39: #{tpu_custom_call.1} parent=1 // pred_check_branch
      %77 = sbr.rel (0) target = $region41
    $region40: #{tpu_custom_call.1} parent=1 // pred_region
      %78 = dma.done [#allocation6], 2048
    $region41: #{tpu_custom_call.1} parent=1 // pred_fallthru
      _
    // Predicated region
    $region42: #{tpu_custom_call.1} parent=1 // pred_check
      _
    $region43: #{tpu_custom_call.1} parent=1 // pred_check_branch
      %80 = sbr.rel (0) target = $region45
    $region44: #{tpu_custom_call.1} parent=1 // pred_region
      %81 = dma.done [#allocation6], 6144
    $region45: #{tpu_custom_call.1} parent=1 // pred_fallthru
      _
    // Predicated region
    $region46: #{tpu_custom_call.1} parent=1 // pred_check
      _
    $region47: #{tpu_custom_call.1} parent=1 // pred_check_branch
      %83 = sbr.rel (0) target = $region49
    $region48: #{tpu_custom_call.1} parent=1 // pred_region
      %84 = dma.done [#allocation9], 6144
    $region49: #{tpu_custom_call.1} parent=1 // pred_fallthru
      _
    %v85 = vld [vmem:[#allocation2] sm:$0xff]
    %v86 = vld [vmem:[#allocation2 + $0x8] sm:$0xff]
    %v87 = vld [vmem:[#allocation2 + $0x10] sm:$0xff]
    %v88 = vld [vmem:[#allocation2 + $0x18] sm:$0xff]
    %v89 = vld [vmem:[#allocation5] sm:$0xff]
    %v90 = vld [vmem:[#allocation5 + $0x8] sm:$0xff]
    %v91 = vld [vmem:[#allocation5 + $0x10] sm:$0xff]
    %v92 = vld [vmem:[#allocation5 + $0x18] sm:$0xff]
    %v93 = vld [vmem:[#allocation5 + $0x20] sm:$0xff]
    %v94 = vld [vmem:[#allocation5 + $0x28] sm:$0xff]
    %v95 = vld [vmem:[#allocation5 + $0x30] sm:$0xff]
    %v96 = vld [vmem:[#allocation5 + $0x38] sm:$0xff]
    %v97 = vld [vmem:[#allocation5 + $0x40] sm:$0xff]
    %v98 = vld [vmem:[#allocation5 + $0x48] sm:$0xff]
    %v99 = vld [vmem:[#allocation5 + $0x50] sm:$0xff]
    %v100 = vld [vmem:[#allocation5 + $0x58] sm:$0xff]
    %v101 = vld [vmem:[#allocation5 + $0x60] sm:$0xff]
    %v102 = vld [vmem:[#allocation5 + $0x68] sm:$0xff]
    %v103 = vld [vmem:[#allocation5 + $0x70] sm:$0xff]
    %v104 = vld [vmem:[#allocation5 + $0x78] sm:$0xff]
    %v105 = vlaneseq
    %v106 = vshrl.u32 %v105, 7
    %v107 = vadd.s32 %v106, 8
    %v108 = vadd.s32 %v106, 16
    %v109 = vadd.s32 %v106, 24
    %vm110 = vcmp.lt.s32.totalorder %v106, 0
    %v111 = vsub.s32 0, %v106
    %v112 = vsel %vm110, %v111, %v106
    %v113 = vshrl.u32 %v112, 4
    %v114 = vand.u32 %v112, 15
    %v115 = vsub.s32 0, %v114
    %v116 = vsel %vm110, %v115, %v114
    %vm117 = vcmp.lt.s32.totalorder %v107, 0
    %v118 = vsub.s32 0, %v107
    %v119 = vsel %vm117, %v118, %v107
    %v120 = vshrl.u32 %v119, 4
    %v121 = vand.u32 %v119, 15
    %v122 = vsub.s32 0, %v121
    %v123 = vsel %vm117, %v122, %v121
    %vm124 = vcmp.lt.s32.totalorder %v108, 0
    %v125 = vsub.s32 0, %v108
    %v126 = vsel %vm124, %v125, %v108
    %v127 = vshrl.u32 %v126, 4
    %v128 = vand.u32 %v126, 15
    %v129 = vsub.s32 0, %v128
    %v130 = vsel %vm124, %v129, %v128
    %vm131 = vcmp.lt.s32.totalorder %v109, 0
    %v132 = vsub.s32 0, %v109
    %v133 = vsel %vm131, %v132, %v109
    %v134 = vshrl.u32 %v133, 4
    %v135 = vand.u32 %v133, 15
    %v136 = vsub.s32 0, %v135
    %v137 = vsel %vm131, %v136, %v135
    %vm138 = vcmp.ne.s32.totalorder %v116, 0
    %vm139 = vcmp.ne.s32.totalorder %v123, 0
    %vm140 = vcmp.ne.s32.totalorder %v130, 0
    %vm141 = vcmp.ne.s32.totalorder %v137, 0
    %vm142 = vcmp.lt.s32.totalorder %v116, 0
    %vm143 = vcmp.lt.s32.totalorder %v123, 0
    %vm144 = vcmp.lt.s32.totalorder %v130, 0
    %vm145 = vcmp.lt.s32.totalorder %v137, 0
    %vm146 = vmand %vm142, %vm138
    %vm147 = vmand %vm143, %vm139
    %vm148 = vmand %vm144, %vm140
    %vm149 = vmand %vm145, %vm141
    %v150 = vadd.s32 %v116, 16
    %v151 = vadd.s32 %v123, 16
    %v152 = vadd.s32 %v130, 16
    %v153 = vadd.s32 %v137, 16
    %v154 = vsel %vm146, %v150, %v116
    %v155 = vsel %vm147, %v151, %v123
    %v156 = vsel %vm148, %v152, %v130
    %v157 = vsel %vm149, %v153, %v137
    %vm158 = vcmp.eq.s32.totalorder %v154, 0
    %vm159 = vcmp.eq.s32.totalorder %v155, 0
    %vm160 = vcmp.eq.s32.totalorder %v156, 0
    %vm161 = vcmp.eq.s32.totalorder %v157, 0
    %vm162 = vcmp.eq.s32.totalorder %v154, 15
    %vm163 = vcmp.eq.s32.totalorder %v155, 15
    %vm164 = vcmp.eq.s32.totalorder %v156, 15
    %vm165 = vcmp.eq.s32.totalorder %v157, 15
    %v166 = vld [vmem:[%s2] sm:$0x1]
    %v167 = vld [vmem:[%s3] sm:$0x1]
    %v168 = vadd.f32 %v85, %v86
    %v169 = vadd.f32 %v168, %v87
    %v170 = vadd.f32 %v169, %v88
    %v171 = vrot.slane %v170, 4
    %v172 = vadd.f32 %v170, %v171
    %v173 = vrot.slane %v172, 2
    %v174 = vadd.f32 %v172, %v173
    %v175 = vrot.slane %v174, 1
    %v176 = vadd.f32 %v174, %v175
    %v177 = vmul.f32 %v85, %v85
    %v178 = vmul.f32 %v86, %v86
    %v179 = vmul.f32 %v87, %v87
    %v180 = vmul.f32 %v88, %v88
    %v181 = vadd.f32 %v177, %v178
    %v182 = vadd.f32 %v181, %v179
    %v183 = vadd.f32 %v182, %v180
    %v184 = vrot.slane %v183, 4
    %v185 = vadd.f32 %v183, %v184
    %v186 = vrot.slane %v185, 2
    %v187 = vadd.f32 %v185, %v186
    %v188 = vrot.slane %v187, 1
    %v189 = vadd.f32 %v187, %v188
    %190 = vmatprep.subr.mxu0 0.0
    %191 = vmatpush1.msra.mxu0 %v104
    %192 = vmatprep.subr.mxu0 0.0
    %193 = vmatpush1.msra.mxu0 %v103
    %194 = vmatprep.subr.mxu0 0.0
    %195 = vmatpush1.msra.mxu0 %v102
    %196 = vmatprep.subr.mxu0 0.0
    %197 = vmatpush1.msra.mxu0 %v101
    %198 = vmatprep.subr.mxu0 0.0
    %199 = vmatpush1.msra.mxu0 %v100
    %200 = vmatprep.subr.mxu0 0.0
    %201 = vmatpush1.msra.mxu0 %v99
    %202 = vmatprep.subr.mxu0 0.0
    %203 = vmatpush1.msra.mxu0 %v98
    %204 = vmatprep.subr.mxu0 0.0
    %205 = vmatpush1.msra.mxu0 %v97
    %206 = vmatprep.subr.mxu0 0.0
    %207 = vmatpush1.msra.mxu0 %v96
    %208 = vmatprep.subr.mxu0 0.0
    %209 = vmatpush1.msra.mxu0 %v95
    %210 = vmatprep.subr.mxu0 0.0
    %211 = vmatpush1.msra.mxu0 %v94
    %212 = vmatprep.subr.mxu0 0.0
    %213 = vmatpush1.msra.mxu0 %v93
    %214 = vmatprep.subr.mxu0 0.0
    %215 = vmatpush1.msra.mxu0 %v92
    %216 = vmatprep.subr.mxu0 0.0
    %217 = vmatpush1.msra.mxu0 %v91
    %218 = vmatprep.subr.mxu0 0.0
    %219 = vmatpush1.msra.mxu0 %v90
    %220 = vmatprep.subr.mxu0 0.0
    %221 = vmatpush1.msra.mxu0 %v89
    %222 = vmatprep.subr.mxu0 0.0
    %223 = vmatpush2.msra.mxu0 0.0
    %224 = vmatprep.subr.mxu0 0.0
    %225 = vmatpush2.msra.mxu0 0.0
    %226 = vmatprep.subr.mxu0 0.0
    %227 = vmatpush2.msra.mxu0 0.0
    %228 = vmatprep.subr.mxu0 0.0
    %229 = vmatpush2.msra.mxu0 0.0
    %230 = vmatprep.subr.mxu0 0.0
    %231 = vmatpush2.msra.mxu0 0.0
    %232 = vmatprep.subr.mxu0 0.0
    %233 = vmatpush2.msra.mxu0 0.0
    %234 = vmatprep.subr.mxu0 0.0
    %235 = vmatpush2.msra.mxu0 0.0
    %236 = vmatprep.subr.mxu0 0.0
    %237 = vmatpush2.msra.mxu0 0.0
    %238 = vmatprep.subr.mxu0 0.0
    %239 = vmatpush2.msra.mxu0 0.0
    %240 = vmatprep.subr.mxu0 0.0
    %241 = vmatpush2.msra.mxu0 0.0
    %242 = vmatprep.subr.mxu0 0.0
    %243 = vmatpush2.msra.mxu0 0.0
    %244 = vmatprep.subr.mxu0 0.0
    %245 = vmatpush2.msra.mxu0 0.0
    %246 = vmatprep.subr.mxu0 0.0
    %247 = vmatpush2.msra.mxu0 0.0
    %248 = vmatprep.subr.mxu0 0.0
    %249 = vmatpush2.msra.mxu0 0.0
    %250 = vmatprep.subr.mxu0 0.0
    %251 = vmatpush2.msra.mxu0 0.0
    %252 = vmatprep.subr.mxu0 0.0
    %253 = vmatpush2.msra.mxu0 0.0
    %254 = vmatprep.mubr.f32.mxu0 0.0
    %255 = vmatmul.mubr.f32.gmra.mxu0 %v176
    %v256 = vpop.f32.mrf.mxu0
    %v257 = vadd.f32 0.0, %v256
    %v258 = vpop.f32.mrf.mxu0
    %259 = vdwg.mxu0
    %v260 = vmul.f32 %v257, 0.001953125
    %261 = vmatprep.subr.mxu0 0.0
    %262 = vmatpush1.msra.mxu0 %v104
    %263 = vmatprep.subr.mxu0 0.0
    %264 = vmatpush1.msra.mxu0 %v103
    %265 = vmatprep.subr.mxu0 0.0
    %266 = vmatpush1.msra.mxu0 %v102
    %267 = vmatprep.subr.mxu0 0.0
    %268 = vmatpush1.msra.mxu0 %v101
    %269 = vmatprep.subr.mxu0 0.0
    %270 = vmatpush1.msra.mxu0 %v100
    %271 = vmatprep.subr.mxu0 0.0
    %272 = vmatpush1.msra.mxu0 %v99
    %273 = vmatprep.subr.mxu0 0.0
    %274 = vmatpush1.msra.mxu0 %v98
    %275 = vmatprep.subr.mxu0 0.0
    %276 = vmatpush1.msra.mxu0 %v97
    %277 = vmatprep.subr.mxu0 0.0
    %278 = vmatpush1.msra.mxu0 %v96
    %279 = vmatprep.subr.mxu0 0.0
    %280 = vmatpush1.msra.mxu0 %v95
    %281 = vmatprep.subr.mxu0 0.0
    %282 = vmatpush1.msra.mxu0 %v94
    %283 = vmatprep.subr.mxu0 0.0
    %284 = vmatpush1.msra.mxu0 %v93
    %285 = vmatprep.subr.mxu0 0.0
    %286 = vmatpush1.msra.mxu0 %v92
    %287 = vmatprep.subr.mxu0 0.0
    %288 = vmatpush1.msra.mxu0 %v91
    %289 = vmatprep.subr.mxu0 0.0
    %290 = vmatpush1.msra.mxu0 %v90
    %291 = vmatprep.subr.mxu0 0.0
    %292 = vmatpush1.msra.mxu0 %v89
    %293 = vmatprep.subr.mxu0 0.0
    %294 = vmatpush2.msra.mxu0 0.0
    %295 = vmatprep.subr.mxu0 0.0
    %296 = vmatpush2.msra.mxu0 0.0
    %297 = vmatprep.subr.mxu0 0.0
    %298 = vmatpush2.msra.mxu0 0.0
    %299 = vmatprep.subr.mxu0 0.0
    %300 = vmatpush2.msra.mxu0 0.0
    %301 = vmatprep.subr.mxu0 0.0
    %302 = vmatpush2.msra.mxu0 0.0
    %303 = vmatprep.subr.mxu0 0.0
    %304 = vmatpush2.msra.mxu0 0.0
    %305 = vmatprep.subr.mxu0 0.0
    %306 = vmatpush2.msra.mxu0 0.0
    %307 = vmatprep.subr.mxu0 0.0
    %308 = vmatpush2.msra.mxu0 0.0
    %309 = vmatprep.subr.mxu0 0.0
    %310 = vmatpush2.msra.mxu0 0.0
    %311 = vmatprep.subr.mxu0 0.0
    %312 = vmatpush2.msra.mxu0 0.0
    %313 = vmatprep.subr.mxu0 0.0
    %314 = vmatpush2.msra.mxu0 0.0
    %315 = vmatprep.subr.mxu0 0.0
    %316 = vmatpush2.msra.mxu0 0.0
    %317 = vmatprep.subr.mxu0 0.0
    %318 = vmatpush2.msra.mxu0 0.0
    %319 = vmatprep.subr.mxu0 0.0
    %320 = vmatpush2.msra.mxu0 0.0
    %321 = vmatprep.subr.mxu0 0.0
    %322 = vmatpush2.msra.mxu0 0.0
    %323 = vmatprep.subr.mxu0 0.0
    %324 = vmatpush2.msra.mxu0 0.0
    %325 = vmatprep.mubr.f32.mxu0 0.0
    %326 = vmatmul.mubr.f32.gmra.mxu0 %v189
    %v327 = vpop.f32.mrf.mxu0
    %v328 = vadd.f32 0.0, %v327
    %v329 = vpop.f32.mrf.mxu0
    %330 = vdwg.mxu0
    %v331 = vmul.f32 %v328, 0.001953125
    %v332 = vmul.f32 %v260, %v260
    %v333 = vsub.f32 %v331, %v332
    %v334 = vadd.f32 %v333, 1e-05
    %v335 = vrsqrt.pop %v334
    %v336 = vmul.f32 %v166, %v335
    %v337 = vmul.f32 %v260, %v336
    %v338 = vsub.f32 %v167, %v337
    %v340 = vlaneseq
    %v341 = vshrl.u32 %v340, 7
    %v342 = vsub.s32 0, %v341
    %v343 = vrot.slane %v336, %v342
    %v345 = vmul.f32 %v85, %v343
    %v346 = vmul.f32 %v86, %v343
    %v347 = vmul.f32 %v87, %v343
    %v348 = vmul.f32 %v88, %v343
    %v350 = vlaneseq
    %v351 = vshrl.u32 %v350, 7
    %v352 = vsub.s32 0, %v351
    %v353 = vrot.slane %v338, %v352
    %v355 = vadd.f32 %v345, %v353
    %v356 = vadd.f32 %v346, %v353
    %v357 = vadd.f32 %v347, %v353
    %v358 = vadd.f32 %v348, %v353
    %v359 = vmax.f32 %v355, 0.0
    %v360 = vmax.f32 %v356, 0.0
    %v361 = vmax.f32 %v357, 0.0
    %v362 = vmax.f32 %v358, 0.0
    %v363 = vrot.slane %v359, 7
    %v364 = vrot.slane %v360, 7
    %v365 = vrot.slane %v361, 7
    %v366 = vrot.slane %v362, 7
    %vm367 = vcmp.lt.s32.totalorder %v106, 1
    %v368 = vsel %vm367, %v365, %v366
    %v369 = vsel %vm367, %v364, %v365
    %v370 = vsel %vm367, %v363, %v364
    %v371 = vsel %vm367, %v366, %v363
    %v372 = vsel %vm158, 0.0, %v371
    %v373 = vsel %vm159, 0.0, %v370
    %v374 = vsel %vm160, 0.0, %v369
    %v375 = vsel %vm161, 0.0, %v368
    %v376 = vrot.slane %v359, 1
    %v377 = vrot.slane %v360, 1
    %v378 = vrot.slane %v361, 1
    %v379 = vrot.slane %v362, 1
    %vm380 = vcmp.lt.s32.totalorder %v106, 7
    %v381 = vsel %vm380, %v378, %v379
    %v382 = vsel %vm380, %v377, %v378
    %v383 = vsel %vm380, %v376, %v377
    %v384 = vsel %vm380, %v379, %v376
    %v385 = vsel %vm162, 0.0, %v383
    %v386 = vsel %vm163, 0.0, %v382
    %v387 = vsel %vm164, 0.0, %v381
    %v388 = vsel %vm165, 0.0, %v384
    %v389 = vld [vmem:[#allocation7] sm:$0xff]
    %v390 = vld [vmem:[#allocation7 + $0x8] sm:$0xff]
    %v391 = vld [vmem:[#allocation7 + $0x10] sm:$0xff]
    %v392 = vld [vmem:[#allocation7 + $0x18] sm:$0xff]
    %v393 = vld [vmem:[#allocation7 + $0x20] sm:$0xff]
    %v394 = vld [vmem:[#allocation7 + $0x28] sm:$0xff]
    %v395 = vld [vmem:[#allocation7 + $0x30] sm:$0xff]
    %v396 = vld [vmem:[#allocation7 + $0x38] sm:$0xff]
    %v397 = vld [vmem:[#allocation7 + $0x40] sm:$0xff]
    %v398 = vld [vmem:[#allocation7 + $0x48] sm:$0xff]
    %v399 = vld [vmem:[#allocation7 + $0x50] sm:$0xff]
    %v400 = vld [vmem:[#allocation7 + $0x58] sm:$0xff]
    %v401 = vld [vmem:[#allocation7 + $0x60] sm:$0xff]
    %v402 = vld [vmem:[#allocation7 + $0x68] sm:$0xff]
    %v403 = vld [vmem:[#allocation7 + $0x70] sm:$0xff]
    %v404 = vld [vmem:[#allocation7 + $0x78] sm:$0xff]
    %v405 = vld [vmem:[#allocation7 + $0x80] sm:$0xff]
    %v406 = vld [vmem:[#allocation7 + $0x88] sm:$0xff]
    %v407 = vld [vmem:[#allocation7 + $0x90] sm:$0xff]
    %v408 = vld [vmem:[#allocation7 + $0x98] sm:$0xff]
    %v409 = vld [vmem:[#allocation7 + $0xa0] sm:$0xff]
    %v410 = vld [vmem:[#allocation7 + $0xa8] sm:$0xff]
    %v411 = vld [vmem:[#allocation7 + $0xb0] sm:$0xff]
    %v412 = vld [vmem:[#allocation7 + $0xb8] sm:$0xff]
    %v413 = vld [vmem:[#allocation7 + $0xc0] sm:$0xff]
    %v414 = vld [vmem:[#allocation7 + $0xc8] sm:$0xff]
    %v415 = vld [vmem:[#allocation7 + $0xd0] sm:$0xff]
    %v416 = vld [vmem:[#allocation7 + $0xd8] sm:$0xff]
    %v417 = vld [vmem:[#allocation7 + $0xe0] sm:$0xff]
    %v418 = vld [vmem:[#allocation7 + $0xe8] sm:$0xff]
    %v419 = vld [vmem:[#allocation7 + $0xf0] sm:$0xff]
    %v420 = vld [vmem:[#allocation7 + $0xf8] sm:$0xff]
    %v421 = vld [vmem:[#allocation7 + $0x100] sm:$0xff]
    %v422 = vld [vmem:[#allocation7 + $0x108] sm:$0xff]
    %v423 = vld [vmem:[#allocation7 + $0x110] sm:$0xff]
    %v424 = vld [vmem:[#allocation7 + $0x118] sm:$0xff]
    %v425 = vld [vmem:[#allocation7 + $0x120] sm:$0xff]
    %v426 = vld [vmem:[#allocation7 + $0x128] sm:$0xff]
    %v427 = vld [vmem:[#allocation7 + $0x130] sm:$0xff]
    %v428 = vld [vmem:[#allocation7 + $0x138] sm:$0xff]
    %v429 = vld [vmem:[#allocation7 + $0x140] sm:$0xff]
    %v430 = vld [vmem:[#allocation7 + $0x148] sm:$0xff]
    %v431 = vld [vmem:[#allocation7 + $0x150] sm:$0xff]
    %v432 = vld [vmem:[#allocation7 + $0x158] sm:$0xff]
    %v433 = vld [vmem:[#allocation7 + $0x160] sm:$0xff]
    %v434 = vld [vmem:[#allocation7 + $0x168] sm:$0xff]
    %v435 = vld [vmem:[#allocation7 + $0x170] sm:$0xff]
    %v436 = vld [vmem:[#allocation7 + $0x178] sm:$0xff]
    %437 = vmatprep.subr.mxu0 0.0
    %438 = vmatpush1.msra.mxu0 %v404
    %439 = vmatprep.subr.mxu0 0.0
    %440 = vmatpush1.msra.mxu0 %v403
    %441 = vmatprep.subr.mxu0 0.0
    %442 = vmatpush1.msra.mxu0 %v402
    %443 = vmatprep.subr.mxu0 0.0
    %444 = vmatpush1.msra.mxu0 %v401
    %445 = vmatprep.subr.mxu0 0.0
    %446 = vmatpush1.msra.mxu0 %v400
    %447 = vmatprep.subr.mxu0 0.0
    %448 = vmatpush1.msra.mxu0 %v399
    %449 = vmatprep.subr.mxu0 0.0
    %450 = vmatpush1.msra.mxu0 %v398
    %451 = vmatprep.subr.mxu0 0.0
    %452 = vmatpush1.msra.mxu0 %v397
    %453 = vmatprep.subr.mxu0 0.0
    %454 = vmatpush1.msra.mxu0 %v396
    %455 = vmatprep.subr.mxu0 0.0
    %456 = vmatpush1.msra.mxu0 %v395
    %457 = vmatprep.subr.mxu0 0.0
    %458 = vmatpush1.msra.mxu0 %v394
    %459 = vmatprep.subr.mxu0 0.0
    %460 = vmatpush1.msra.mxu0 %v393
    %461 = vmatprep.subr.mxu0 0.0
    %462 = vmatpush1.msra.mxu0 %v392
    %463 = vmatprep.subr.mxu0 0.0
    %464 = vmatpush1.msra.mxu0 %v391
    %465 = vmatprep.subr.mxu0 0.0
    %466 = vmatpush1.msra.mxu0 %v390
    %467 = vmatprep.subr.mxu0 0.0
    %468 = vmatpush1.msra.mxu0 %v389
    %469 = vmatprep.subr.mxu0 0.0
    %470 = vmatpush2.msra.mxu0 %v420
    %471 = vmatprep.subr.mxu0 0.0
    %472 = vmatpush2.msra.mxu0 %v419
    %473 = vmatprep.subr.mxu0 0.0
    %474 = vmatpush2.msra.mxu0 %v418
    %475 = vmatprep.subr.mxu0 0.0
    %476 = vmatpush2.msra.mxu0 %v417
    %477 = vmatprep.subr.mxu0 0.0
    %478 = vmatpush2.msra.mxu0 %v416
    %479 = vmatprep.subr.mxu0 0.0
    %480 = vmatpush2.msra.mxu0 %v415
    %481 = vmatprep.subr.mxu0 0.0
    %482 = vmatpush2.msra.mxu0 %v414
    %483 = vmatprep.subr.mxu0 0.0
    %484 = vmatpush2.msra.mxu0 %v413
    %485 = vmatprep.subr.mxu0 0.0
    %486 = vmatpush2.msra.mxu0 %v412
    %487 = vmatprep.subr.mxu0 0.0
    %488 = vmatpush2.msra.mxu0 %v411
    %489 = vmatprep.subr.mxu0 0.0
    %490 = vmatpush2.msra.mxu0 %v410
    %491 = vmatprep.subr.mxu0 0.0
    %492 = vmatpush2.msra.mxu0 %v409
    %493 = vmatprep.subr.mxu0 0.0
    %494 = vmatpush2.msra.mxu0 %v408
    %495 = vmatprep.subr.mxu0 0.0
    %496 = vmatpush2.msra.mxu0 %v407
    %497 = vmatprep.subr.mxu0 0.0
    %498 = vmatpush2.msra.mxu0 %v406
    %499 = vmatprep.subr.mxu0 0.0
    %500 = vmatpush2.msra.mxu0 %v405
    %501 = vmatprep.mubr.f32.mxu0 %v359
    %502 = vmatmul.mubr.f32.gmra.mxu0 %v372
    %v503 = vpop.f32.mrf.mxu0
    %v504 = vadd.f32 0.0, %v503
    %v505 = vpop.f32.mrf.mxu0
    %506 = vmatprep.mubr.f32.mxu0 %v360
    %507 = vmatmul.mubr.f32.gmra.mxu0 %v373
    %v508 = vpop.f32.mrf.mxu0
    %v509 = vadd.f32 0.0, %v508
    %v510 = vpop.f32.mrf.mxu0
    %511 = vmatprep.mubr.f32.mxu0 %v361
    %512 = vmatmul.mubr.f32.gmra.mxu0 %v374
    %v513 = vpop.f32.mrf.mxu0
    %v514 = vadd.f32 0.0, %v513
    %v515 = vpop.f32.mrf.mxu0
    %516 = vmatprep.mubr.f32.mxu0 %v362
    %517 = vmatmul.mubr.f32.gmra.mxu0 %v375
    %v518 = vpop.f32.mrf.mxu0
    %v519 = vadd.f32 0.0, %v518
    %v520 = vpop.f32.mrf.mxu0
    %521 = vdwg.mxu0
    %522 = vmatprep.subr.mxu0 0.0
    %523 = vmatpush1.msra.mxu0 %v436
    %524 = vmatprep.subr.mxu0 0.0
    %525 = vmatpush1.msra.mxu0 %v435
    %526 = vmatprep.subr.mxu0 0.0
    %527 = vmatpush1.msra.mxu0 %v434
    %528 = vmatprep.subr.mxu0 0.0
    %529 = vmatpush1.msra.mxu0 %v433
    %530 = vmatprep.subr.mxu0 0.0
    %531 = vmatpush1.msra.mxu0 %v432
    %532 = vmatprep.subr.mxu0 0.0
    %533 = vmatpush1.msra.mxu0 %v431
    %534 = vmatprep.subr.mxu0 0.0
    %535 = vmatpush1.msra.mxu0 %v430
    %536 = vmatprep.subr.mxu0 0.0
    %537 = vmatpush1.msra.mxu0 %v429
    %538 = vmatprep.subr.mxu0 0.0
    %539 = vmatpush1.msra.mxu0 %v428
    %540 = vmatprep.subr.mxu0 0.0
    %541 = vmatpush1.msra.mxu0 %v427
    %542 = vmatprep.subr.mxu0 0.0
    %543 = vmatpush1.msra.mxu0 %v426
    %544 = vmatprep.subr.mxu0 0.0
    %545 = vmatpush1.msra.mxu0 %v425
    %546 = vmatprep.subr.mxu0 0.0
    %547 = vmatpush1.msra.mxu0 %v424
    %548 = vmatprep.subr.mxu0 0.0
    %549 = vmatpush1.msra.mxu0 %v423
    %550 = vmatprep.subr.mxu0 0.0
    %551 = vmatpush1.msra.mxu0 %v422
    %552 = vmatprep.subr.mxu0 0.0
    %553 = vmatpush1.msra.mxu0 %v421
    %554 = vmatprep.subr.mxu0 0.0
    %555 = vmatpush2.msra.mxu0 0.0
    %556 = vmatprep.subr.mxu0 0.0
    %557 = vmatpush2.msra.mxu0 0.0
    %558 = vmatprep.subr.mxu0 0.0
    %559 = vmatpush2.msra.mxu0 0.0
    %560 = vmatprep.subr.mxu0 0.0
    %561 = vmatpush2.msra.mxu0 0.0
    %562 = vmatprep.subr.mxu0 0.0
    %563 = vmatpush2.msra.mxu0 0.0
    %564 = vmatprep.subr.mxu0 0.0
    %565 = vmatpush2.msra.mxu0 0.0
    %566 = vmatprep.subr.mxu0 0.0
    %567 = vmatpush2.msra.mxu0 0.0
    %568 = vmatprep.subr.mxu0 0.0
    %569 = vmatpush2.msra.mxu0 0.0
    %570 = vmatprep.subr.mxu0 0.0
    %571 = vmatpush2.msra.mxu0 0.0
    %572 = vmatprep.subr.mxu0 0.0
    %573 = vmatpush2.msra.mxu0 0.0
    %574 = vmatprep.subr.mxu0 0.0
    %575 = vmatpush2.msra.mxu0 0.0
    %576 = vmatprep.subr.mxu0 0.0
    %577 = vmatpush2.msra.mxu0 0.0
    %578 = vmatprep.subr.mxu0 0.0
    %579 = vmatpush2.msra.mxu0 0.0
    %580 = vmatprep.subr.mxu0 0.0
    %581 = vmatpush2.msra.mxu0 0.0
    %582 = vmatprep.subr.mxu0 0.0
    %583 = vmatpush2.msra.mxu0 0.0
    %584 = vmatprep.subr.mxu0 0.0
    %585 = vmatpush2.msra.mxu0 0.0
    %586 = vmatprep.mubr.f32.mxu0 0.0
    %587 = vmatmul.mubr.f32.gmra.mxu0 %v385
    %v588 = vpop.f32.mrf.mxu0
    %v589 = vadd.f32 %v504, %v588
    %v590 = vpop.f32.mrf.mxu0
    %591 = vmatprep.mubr.f32.mxu0 0.0
    %592 = vmatmul.mubr.f32.gmra.mxu0 %v386
    %v593 = vpop.f32.mrf.mxu0
    %v594 = vadd.f32 %v509, %v593
    %v595 = vpop.f32.mrf.mxu0
    %596 = vmatprep.mubr.f32.mxu0 0.0
    %597 = vmatmul.mubr.f32.gmra.mxu0 %v387
    %v598 = vpop.f32.mrf.mxu0
    %v599 = vadd.f32 %v514, %v598
    %v600 = vpop.f32.mrf.mxu0
    %601 = vmatprep.mubr.f32.mxu0 0.0
    %602 = vmatmul.mubr.f32.gmra.mxu0 %v388
    %v603 = vpop.f32.mrf.mxu0
    %v604 = vadd.f32 %v519, %v603
    %v605 = vpop.f32.mrf.mxu0
    %606 = vdwg.mxu0
    %v607 = vld [vmem:[%s5] sm:$0x1]
    %v608 = vld [vmem:[%s6] sm:$0x1]
    %v609 = vadd.f32 %v589, %v594
    %v610 = vadd.f32 %v609, %v599
    %v611 = vadd.f32 %v610, %v604
    %v612 = vrot.slane %v611, 4
    %v613 = vadd.f32 %v611, %v612
    %v614 = vrot.slane %v613, 2
    %v615 = vadd.f32 %v613, %v614
    %v616 = vrot.slane %v615, 1
    %v617 = vadd.f32 %v615, %v616
    %v618 = vmul.f32 %v589, %v589
    %v619 = vmul.f32 %v594, %v594
    %v620 = vmul.f32 %v599, %v599
    %v621 = vmul.f32 %v604, %v604
    %v622 = vadd.f32 %v618, %v619
    %v623 = vadd.f32 %v622, %v620
    %v624 = vadd.f32 %v623, %v621
    %v625 = vrot.slane %v624, 4
    %v626 = vadd.f32 %v624, %v625
    %v627 = vrot.slane %v626, 2
    %v628 = vadd.f32 %v626, %v627
    %v629 = vrot.slane %v628, 1
    %v630 = vadd.f32 %v628, %v629
    %631 = vmatprep.subr.mxu0 0.0
    %632 = vmatpush1.msra.mxu0 %v104
    %633 = vmatprep.subr.mxu0 0.0
    %634 = vmatpush1.msra.mxu0 %v103
    %635 = vmatprep.subr.mxu0 0.0
    %636 = vmatpush1.msra.mxu0 %v102
    %637 = vmatprep.subr.mxu0 0.0
    %638 = vmatpush1.msra.mxu0 %v101
    %639 = vmatprep.subr.mxu0 0.0
    %640 = vmatpush1.msra.mxu0 %v100
    %641 = vmatprep.subr.mxu0 0.0
    %642 = vmatpush1.msra.mxu0 %v99
    %643 = vmatprep.subr.mxu0 0.0
    %644 = vmatpush1.msra.mxu0 %v98
    %645 = vmatprep.subr.mxu0 0.0
    %646 = vmatpush1.msra.mxu0 %v97
    %647 = vmatprep.subr.mxu0 0.0
    %648 = vmatpush1.msra.mxu0 %v96
    %649 = vmatprep.subr.mxu0 0.0
    %650 = vmatpush1.msra.mxu0 %v95
    %651 = vmatprep.subr.mxu0 0.0
    %652 = vmatpush1.msra.mxu0 %v94
    %653 = vmatprep.subr.mxu0 0.0
    %654 = vmatpush1.msra.mxu0 %v93
    %655 = vmatprep.subr.mxu0 0.0
    %656 = vmatpush1.msra.mxu0 %v92
    %657 = vmatprep.subr.mxu0 0.0
    %658 = vmatpush1.msra.mxu0 %v91
    %659 = vmatprep.subr.mxu0 0.0
    %660 = vmatpush1.msra.mxu0 %v90
    %661 = vmatprep.subr.mxu0 0.0
    %662 = vmatpush1.msra.mxu0 %v89
    %663 = vmatprep.subr.mxu0 0.0
    %664 = vmatpush2.msra.mxu0 0.0
    %665 = vmatprep.subr.mxu0 0.0
    %666 = vmatpush2.msra.mxu0 0.0
    %667 = vmatprep.subr.mxu0 0.0
    %668 = vmatpush2.msra.mxu0 0.0
    %669 = vmatprep.subr.mxu0 0.0
    %670 = vmatpush2.msra.mxu0 0.0
    %671 = vmatprep.subr.mxu0 0.0
    %672 = vmatpush2.msra.mxu0 0.0
    %673 = vmatprep.subr.mxu0 0.0
    %674 = vmatpush2.msra.mxu0 0.0
    %675 = vmatprep.subr.mxu0 0.0
    %676 = vmatpush2.msra.mxu0 0.0
    %677 = vmatprep.subr.mxu0 0.0
    %678 = vmatpush2.msra.mxu0 0.0
    %679 = vmatprep.subr.mxu0 0.0
    %680 = vmatpush2.msra.mxu0 0.0
    %681 = vmatprep.subr.mxu0 0.0
    %682 = vmatpush2.msra.mxu0 0.0
    %683 = vmatprep.subr.mxu0 0.0
    %684 = vmatpush2.msra.mxu0 0.0
    %685 = vmatprep.subr.mxu0 0.0
    %686 = vmatpush2.msra.mxu0 0.0
    %687 = vmatprep.subr.mxu0 0.0
    %688 = vmatpush2.msra.mxu0 0.0
    %689 = vmatprep.subr.mxu0 0.0
    %690 = vmatpush2.msra.mxu0 0.0
    %691 = vmatprep.subr.mxu0 0.0
    %692 = vmatpush2.msra.mxu0 0.0
    %693 = vmatprep.subr.mxu0 0.0
    %694 = vmatpush2.msra.mxu0 0.0
    %695 = vmatprep.mubr.f32.mxu0 0.0
    %696 = vmatmul.mubr.f32.gmra.mxu0 %v617
    %v697 = vpop.f32.mrf.mxu0
    %v698 = vadd.f32 0.0, %v697
    %v699 = vpop.f32.mrf.mxu0
    %700 = vdwg.mxu0
    %v701 = vmul.f32 %v698, 0.001953125
    %702 = vmatprep.subr.mxu0 0.0
    %703 = vmatpush1.msra.mxu0 %v104
    %704 = vmatprep.subr.mxu0 0.0
    %705 = vmatpush1.msra.mxu0 %v103
    %706 = vmatprep.subr.mxu0 0.0
    %707 = vmatpush1.msra.mxu0 %v102
    %708 = vmatprep.subr.mxu0 0.0
    %709 = vmatpush1.msra.mxu0 %v101
    %710 = vmatprep.subr.mxu0 0.0
    %711 = vmatpush1.msra.mxu0 %v100
    %712 = vmatprep.subr.mxu0 0.0
    %713 = vmatpush1.msra.mxu0 %v99
    %714 = vmatprep.subr.mxu0 0.0
    %715 = vmatpush1.msra.mxu0 %v98
    %716 = vmatprep.subr.mxu0 0.0
    %717 = vmatpush1.msra.mxu0 %v97
    %718 = vmatprep.subr.mxu0 0.0
    %719 = vmatpush1.msra.mxu0 %v96
    %720 = vmatprep.subr.mxu0 0.0
    %721 = vmatpush1.msra.mxu0 %v95
    %722 = vmatprep.subr.mxu0 0.0
    %723 = vmatpush1.msra.mxu0 %v94
    %724 = vmatprep.subr.mxu0 0.0
    %725 = vmatpush1.msra.mxu0 %v93
    %726 = vmatprep.subr.mxu0 0.0
    %727 = vmatpush1.msra.mxu0 %v92
    %728 = vmatprep.subr.mxu0 0.0
    %729 = vmatpush1.msra.mxu0 %v91
    %730 = vmatprep.subr.mxu0 0.0
    %731 = vmatpush1.msra.mxu0 %v90
    %732 = vmatprep.subr.mxu0 0.0
    %733 = vmatpush1.msra.mxu0 %v89
    %734 = vmatprep.subr.mxu0 0.0
    %735 = vmatpush2.msra.mxu0 0.0
    %736 = vmatprep.subr.mxu0 0.0
    %737 = vmatpush2.msra.mxu0 0.0
    %738 = vmatprep.subr.mxu0 0.0
    %739 = vmatpush2.msra.mxu0 0.0
    %740 = vmatprep.subr.mxu0 0.0
    %741 = vmatpush2.msra.mxu0 0.0
    %742 = vmatprep.subr.mxu0 0.0
    %743 = vmatpush2.msra.mxu0 0.0
    %744 = vmatprep.subr.mxu0 0.0
    %745 = vmatpush2.msra.mxu0 0.0
    %746 = vmatprep.subr.mxu0 0.0
    %747 = vmatpush2.msra.mxu0 0.0
    %748 = vmatprep.subr.mxu0 0.0
    %749 = vmatpush2.msra.mxu0 0.0
    %750 = vmatprep.subr.mxu0 0.0
    %751 = vmatpush2.msra.mxu0 0.0
    %752 = vmatprep.subr.mxu0 0.0
    %753 = vmatpush2.msra.mxu0 0.0
    %754 = vmatprep.subr.mxu0 0.0
    %755 = vmatpush2.msra.mxu0 0.0
    %756 = vmatprep.subr.mxu0 0.0
    %757 = vmatpush2.msra.mxu0 0.0
    %758 = vmatprep.subr.mxu0 0.0
    %759 = vmatpush2.msra.mxu0 0.0
    %760 = vmatprep.subr.mxu0 0.0
    %761 = vmatpush2.msra.mxu0 0.0
    %762 = vmatprep.subr.mxu0 0.0
    %763 = vmatpush2.msra.mxu0 0.0
    %764 = vmatprep.subr.mxu0 0.0
    %765 = vmatpush2.msra.mxu0 0.0
    %766 = vmatprep.mubr.f32.mxu0 0.0
    %767 = vmatmul.mubr.f32.gmra.mxu0 %v630
    %v768 = vpop.f32.mrf.mxu0
    %v769 = vadd.f32 0.0, %v768
    %v770 = vpop.f32.mrf.mxu0
    %771 = vdwg.mxu0
    %v772 = vmul.f32 %v769, 0.001953125
    %v773 = vmul.f32 %v701, %v701
    %v774 = vsub.f32 %v772, %v773
    %v775 = vadd.f32 %v774, 1e-05
    %v776 = vrsqrt.pop %v775
    %v777 = vmul.f32 %v607, %v776
    %v778 = vmul.f32 %v701, %v777
    %v779 = vsub.f32 %v608, %v778
    %v781 = vlaneseq
    %v782 = vshrl.u32 %v781, 7
    %v783 = vsub.s32 0, %v782
    %v784 = vrot.slane %v777, %v783
    %v786 = vmul.f32 %v589, %v784
    %v787 = vmul.f32 %v594, %v784
    %v788 = vmul.f32 %v599, %v784
    %v789 = vmul.f32 %v604, %v784
    %v791 = vlaneseq
    %v792 = vshrl.u32 %v791, 7
    %v793 = vsub.s32 0, %v792
    %v794 = vrot.slane %v779, %v793
    %v796 = vadd.f32 %v786, %v794
    %v797 = vadd.f32 %v787, %v794
    %v798 = vadd.f32 %v788, %v794
    %v799 = vadd.f32 %v789, %v794
    %v800 = vmax.f32 %v796, 0.0
    %v801 = vmax.f32 %v797, 0.0
    %v802 = vmax.f32 %v798, 0.0
    %v803 = vmax.f32 %v799, 0.0
    %v804 = vrot.slane %v800, 7
    %v805 = vrot.slane %v801, 7
    %v806 = vrot.slane %v802, 7
    %v807 = vrot.slane %v803, 7
    %v808 = vsel %vm367, %v806, %v807
    %v809 = vsel %vm367, %v805, %v806
    %v810 = vsel %vm367, %v804, %v805
    %v811 = vsel %vm367, %v807, %v804
    %v812 = vsel %vm158, 0.0, %v811
    %v813 = vsel %vm159, 0.0, %v810
    %v814 = vsel %vm160, 0.0, %v809
    %v815 = vsel %vm161, 0.0, %v808
    %v816 = vrot.slane %v800, 1
    %v817 = vrot.slane %v801, 1
    %v818 = vrot.slane %v802, 1
    %v819 = vrot.slane %v803, 1
    %v820 = vsel %vm380, %v818, %v819
    %v821 = vsel %vm380, %v817, %v818
    %v822 = vsel %vm380, %v816, %v817
    %v823 = vsel %vm380, %v819, %v816
    %v824 = vsel %vm162, 0.0, %v822
    %v825 = vsel %vm163, 0.0, %v821
    %v826 = vsel %vm164, 0.0, %v820
    %v827 = vsel %vm165, 0.0, %v823
    %v828 = vld [vmem:[#allocation8] sm:$0xff]
    %v829 = vld [vmem:[#allocation8 + $0x8] sm:$0xff]
    %v830 = vld [vmem:[#allocation8 + $0x10] sm:$0xff]
    %v831 = vld [vmem:[#allocation8 + $0x18] sm:$0xff]
    %v832 = vld [vmem:[#allocation8 + $0x20] sm:$0xff]
    %v833 = vld [vmem:[#allocation8 + $0x28] sm:$0xff]
    %v834 = vld [vmem:[#allocation8 + $0x30] sm:$0xff]
    %v835 = vld [vmem:[#allocation8 + $0x38] sm:$0xff]
    %v836 = vld [vmem:[#allocation8 + $0x40] sm:$0xff]
    %v837 = vld [vmem:[#allocation8 + $0x48] sm:$0xff]
    %v838 = vld [vmem:[#allocation8 + $0x50] sm:$0xff]
    %v839 = vld [vmem:[#allocation8 + $0x58] sm:$0xff]
    %v840 = vld [vmem:[#allocation8 + $0x60] sm:$0xff]
    %v841 = vld [vmem:[#allocation8 + $0x68] sm:$0xff]
    %v842 = vld [vmem:[#allocation8 + $0x70] sm:$0xff]
    %v843 = vld [vmem:[#allocation8 + $0x78] sm:$0xff]
    %v844 = vld [vmem:[#allocation8 + $0x80] sm:$0xff]
    %v845 = vld [vmem:[#allocation8 + $0x88] sm:$0xff]
    %v846 = vld [vmem:[#allocation8 + $0x90] sm:$0xff]
    %v847 = vld [vmem:[#allocation8 + $0x98] sm:$0xff]
    %v848 = vld [vmem:[#allocation8 + $0xa0] sm:$0xff]
    %v849 = vld [vmem:[#allocation8 + $0xa8] sm:$0xff]
    %v850 = vld [vmem:[#allocation8 + $0xb0] sm:$0xff]
    %v851 = vld [vmem:[#allocation8 + $0xb8] sm:$0xff]
    %v852 = vld [vmem:[#allocation8 + $0xc0] sm:$0xff]
    %v853 = vld [vmem:[#allocation8 + $0xc8] sm:$0xff]
    %v854 = vld [vmem:[#allocation8 + $0xd0] sm:$0xff]
    %v855 = vld [vmem:[#allocation8 + $0xd8] sm:$0xff]
    %v856 = vld [vmem:[#allocation8 + $0xe0] sm:$0xff]
    %v857 = vld [vmem:[#allocation8 + $0xe8] sm:$0xff]
    %v858 = vld [vmem:[#allocation8 + $0xf0] sm:$0xff]
    %v859 = vld [vmem:[#allocation8 + $0xf8] sm:$0xff]
    %v860 = vld [vmem:[#allocation8 + $0x100] sm:$0xff]
    %v861 = vld [vmem:[#allocation8 + $0x108] sm:$0xff]
    %v862 = vld [vmem:[#allocation8 + $0x110] sm:$0xff]
    %v863 = vld [vmem:[#allocation8 + $0x118] sm:$0xff]
    %v864 = vld [vmem:[#allocation8 + $0x120] sm:$0xff]
    %v865 = vld [vmem:[#allocation8 + $0x128] sm:$0xff]
    %v866 = vld [vmem:[#allocation8 + $0x130] sm:$0xff]
    %v867 = vld [vmem:[#allocation8 + $0x138] sm:$0xff]
    %v868 = vld [vmem:[#allocation8 + $0x140] sm:$0xff]
    %v869 = vld [vmem:[#allocation8 + $0x148] sm:$0xff]
    %v870 = vld [vmem:[#allocation8 + $0x150] sm:$0xff]
    %v871 = vld [vmem:[#allocation8 + $0x158] sm:$0xff]
    %v872 = vld [vmem:[#allocation8 + $0x160] sm:$0xff]
    %v873 = vld [vmem:[#allocation8 + $0x168] sm:$0xff]
    %v874 = vld [vmem:[#allocation8 + $0x170] sm:$0xff]
    %v875 = vld [vmem:[#allocation8 + $0x178] sm:$0xff]
    %876 = vmatprep.subr.mxu0 0.0
    %877 = vmatpush1.msra.mxu0 %v843
    %878 = vmatprep.subr.mxu0 0.0
    %879 = vmatpush1.msra.mxu0 %v842
    %880 = vmatprep.subr.mxu0 0.0
    %881 = vmatpush1.msra.mxu0 %v841
    %882 = vmatprep.subr.mxu0 0.0
    %883 = vmatpush1.msra.mxu0 %v840
    %884 = vmatprep.subr.mxu0 0.0
    %885 = vmatpush1.msra.mxu0 %v839
    %886 = vmatprep.subr.mxu0 0.0
    %887 = vmatpush1.msra.mxu0 %v838
    %888 = vmatprep.subr.mxu0 0.0
    %889 = vmatpush1.msra.mxu0 %v837
    %890 = vmatprep.subr.mxu0 0.0
    %891 = vmatpush1.msra.mxu0 %v836
    %892 = vmatprep.subr.mxu0 0.0
    %893 = vmatpush1.msra.mxu0 %v835
    %894 = vmatprep.subr.mxu0 0.0
    %895 = vmatpush1.msra.mxu0 %v834
    %896 = vmatprep.subr.mxu0 0.0
    %897 = vmatpush1.msra.mxu0 %v833
    %898 = vmatprep.subr.mxu0 0.0
    %899 = vmatpush1.msra.mxu0 %v832
    %900 = vmatprep.subr.mxu0 0.0
    %901 = vmatpush1.msra.mxu0 %v831
    %902 = vmatprep.subr.mxu0 0.0
    %903 = vmatpush1.msra.mxu0 %v830
    %904 = vmatprep.subr.mxu0 0.0
    %905 = vmatpush1.msra.mxu0 %v829
    %906 = vmatprep.subr.mxu0 0.0
    %907 = vmatpush1.msra.mxu0 %v828
    %908 = vmatprep.subr.mxu0 0.0
    %909 = vmatpush2.msra.mxu0 %v859
    %910 = vmatprep.subr.mxu0 0.0
    %911 = vmatpush2.msra.mxu0 %v858
    %912 = vmatprep.subr.mxu0 0.0
    %913 = vmatpush2.msra.mxu0 %v857
    %914 = vmatprep.subr.mxu0 0.0
    %915 = vmatpush2.msra.mxu0 %v856
    %916 = vmatprep.subr.mxu0 0.0
    %917 = vmatpush2.msra.mxu0 %v855
    %918 = vmatprep.subr.mxu0 0.0
    %919 = vmatpush2.msra.mxu0 %v854
    %920 = vmatprep.subr.mxu0 0.0
    %921 = vmatpush2.msra.mxu0 %v853
    %922 = vmatprep.subr.mxu0 0.0
    %923 = vmatpush2.msra.mxu0 %v852
    %924 = vmatprep.subr.mxu0 0.0
    %925 = vmatpush2.msra.mxu0 %v851
    %926 = vmatprep.subr.mxu0 0.0
    %927 = vmatpush2.msra.mxu0 %v850
    %928 = vmatprep.subr.mxu0 0.0
    %929 = vmatpush2.msra.mxu0 %v849
    %930 = vmatprep.subr.mxu0 0.0
    %931 = vmatpush2.msra.mxu0 %v848
    %932 = vmatprep.subr.mxu0 0.0
    %933 = vmatpush2.msra.mxu0 %v847
    %934 = vmatprep.subr.mxu0 0.0
    %935 = vmatpush2.msra.mxu0 %v846
    %936 = vmatprep.subr.mxu0 0.0
    %937 = vmatpush2.msra.mxu0 %v845
    %938 = vmatprep.subr.mxu0 0.0
    %939 = vmatpush2.msra.mxu0 %v844
    %940 = vmatprep.mubr.f32.mxu0 %v800
    %941 = vmatmul.mubr.f32.gmra.mxu0 %v812
    %v942 = vpop.f32.mrf.mxu0
    %v943 = vadd.f32 %v85, %v942
    %v944 = vpop.f32.mrf.mxu0
    %945 = vmatprep.mubr.f32.mxu0 %v801
    %946 = vmatmul.mubr.f32.gmra.mxu0 %v813
    %v947 = vpop.f32.mrf.mxu0
    %v948 = vadd.f32 %v86, %v947
    %v949 = vpop.f32.mrf.mxu0
    %950 = vmatprep.mubr.f32.mxu0 %v802
    %951 = vmatmul.mubr.f32.gmra.mxu0 %v814
    %v952 = vpop.f32.mrf.mxu0
    %v953 = vadd.f32 %v87, %v952
    %v954 = vpop.f32.mrf.mxu0
    %955 = vmatprep.mubr.f32.mxu0 %v803
    %956 = vmatmul.mubr.f32.gmra.mxu0 %v815
    %v957 = vpop.f32.mrf.mxu0
    %v958 = vadd.f32 %v88, %v957
    %v959 = vpop.f32.mrf.mxu0
    %960 = vdwg.mxu0
    %961 = vmatprep.subr.mxu0 0.0
    %962 = vmatpush1.msra.mxu0 %v875
    %963 = vmatprep.subr.mxu0 0.0
    %964 = vmatpush1.msra.mxu0 %v874
    %965 = vmatprep.subr.mxu0 0.0
    %966 = vmatpush1.msra.mxu0 %v873
    %967 = vmatprep.subr.mxu0 0.0
    %968 = vmatpush1.msra.mxu0 %v872
    %969 = vmatprep.subr.mxu0 0.0
    %970 = vmatpush1.msra.mxu0 %v871
    %971 = vmatprep.subr.mxu0 0.0
    %972 = vmatpush1.msra.mxu0 %v870
    %973 = vmatprep.subr.mxu0 0.0
    %974 = vmatpush1.msra.mxu0 %v869
    %975 = vmatprep.subr.mxu0 0.0
    %976 = vmatpush1.msra.mxu0 %v868
    %977 = vmatprep.subr.mxu0 0.0
    %978 = vmatpush1.msra.mxu0 %v867
    %979 = vmatprep.subr.mxu0 0.0
    %980 = vmatpush1.msra.mxu0 %v866
    %981 = vmatprep.subr.mxu0 0.0
    %982 = vmatpush1.msra.mxu0 %v865
    %983 = vmatprep.subr.mxu0 0.0
    %984 = vmatpush1.msra.mxu0 %v864
    %985 = vmatprep.subr.mxu0 0.0
    %986 = vmatpush1.msra.mxu0 %v863
    %987 = vmatprep.subr.mxu0 0.0
    %988 = vmatpush1.msra.mxu0 %v862
    %989 = vmatprep.subr.mxu0 0.0
    %990 = vmatpush1.msra.mxu0 %v861
    %991 = vmatprep.subr.mxu0 0.0
    %992 = vmatpush1.msra.mxu0 %v860
    %993 = vmatprep.subr.mxu0 0.0
    %994 = vmatpush2.msra.mxu0 0.0
    %995 = vmatprep.subr.mxu0 0.0
    %996 = vmatpush2.msra.mxu0 0.0
    %997 = vmatprep.subr.mxu0 0.0
    %998 = vmatpush2.msra.mxu0 0.0
    %999 = vmatprep.subr.mxu0 0.0
    %1000 = vmatpush2.msra.mxu0 0.0
    %1001 = vmatprep.subr.mxu0 0.0
    %1002 = vmatpush2.msra.mxu0 0.0
    %1003 = vmatprep.subr.mxu0 0.0
    %1004 = vmatpush2.msra.mxu0 0.0
    %1005 = vmatprep.subr.mxu0 0.0
    %1006 = vmatpush2.msra.mxu0 0.0
    %1007 = vmatprep.subr.mxu0 0.0
    %1008 = vmatpush2.msra.mxu0 0.0
    %1009 = vmatprep.subr.mxu0 0.0
    %1010 = vmatpush2.msra.mxu0 0.0
    %1011 = vmatprep.subr.mxu0 0.0
    %1012 = vmatpush2.msra.mxu0 0.0
    %1013 = vmatprep.subr.mxu0 0.0
    %1014 = vmatpush2.msra.mxu0 0.0
    %1015 = vmatprep.subr.mxu0 0.0
    %1016 = vmatpush2.msra.mxu0 0.0
    %1017 = vmatprep.subr.mxu0 0.0
    %1018 = vmatpush2.msra.mxu0 0.0
    %1019 = vmatprep.subr.mxu0 0.0
    %1020 = vmatpush2.msra.mxu0 0.0
    %1021 = vmatprep.subr.mxu0 0.0
    %1022 = vmatpush2.msra.mxu0 0.0
    %1023 = vmatprep.subr.mxu0 0.0
    %1024 = vmatpush2.msra.mxu0 0.0
    %1025 = vmatprep.mubr.f32.mxu0 0.0
    %1026 = vmatmul.mubr.f32.gmra.mxu0 %v824
    %v1027 = vpop.f32.mrf.mxu0
    %v1028 = vadd.f32 %v943, %v1027
    %v1029 = vpop.f32.mrf.mxu0
    %1030 = vmatprep.mubr.f32.mxu0 0.0
    %1031 = vmatmul.mubr.f32.gmra.mxu0 %v825
    %v1032 = vpop.f32.mrf.mxu0
    %v1033 = vadd.f32 %v948, %v1032
    %v1034 = vpop.f32.mrf.mxu0
    %1035 = vmatprep.mubr.f32.mxu0 0.0
    %1036 = vmatmul.mubr.f32.gmra.mxu0 %v826
    %v1037 = vpop.f32.mrf.mxu0
    %v1038 = vadd.f32 %v953, %v1037
    %v1039 = vpop.f32.mrf.mxu0
    %1040 = vmatprep.mubr.f32.mxu0 0.0
    %1041 = vmatmul.mubr.f32.gmra.mxu0 %v827
    %v1042 = vpop.f32.mrf.mxu0
    %v1043 = vadd.f32 %v958, %v1042
    %v1044 = vpop.f32.mrf.mxu0
    %1045 = vdwg.mxu0
    %1046 = vst [vmem:[#allocation10] sm:$0xff] %v1028
    %1047 = vst [vmem:[#allocation10 + $0x8] sm:$0xff] %v1033
    %1048 = vst [vmem:[#allocation10 + $0x10] sm:$0xff] %v1038
    %1049 = vst [vmem:[#allocation10 + $0x18] sm:$0xff] %v1043
    // Predicated region
    $region50: #{tpu_custom_call.1} parent=1 // pred_check
      _
    $region51: #{tpu_custom_call.1} parent=1 // pred_check_branch
      %1051 = sbr.rel (0) target = $region53
    $region52: #{tpu_custom_call.1} parent=1 // pred_region
      %s1053 = ssub.s32 512, 512
      %1054 = vsyncadd [#allocation4], %s1053
      %s1055 = sshll.u32 [#allocation10], 4
      %s1056 = int_to_ptr.vmem [resolvable:$true] %s1055
      %1061 = dma.vmem_to_hbm [thread:$0]  %s1056, 512, %s8, [#allocation4], 128, 128, 8
    $region53: #{tpu_custom_call.1} parent=1 // pred_fallthru
      _
    // Predicated region
    $region54: #{tpu_custom_call.1} parent=1 // pred_check
      _
    $region55: #{tpu_custom_call.1} parent=1 // pred_check_branch
      %1063 = sbr.rel (0) target = $region57
    $region56: #{tpu_custom_call.1} parent=1 // pred_region
      %1064 = dma.done [#allocation4], 512
    $region57: #{tpu_custom_call.1} parent=1 // pred_fallthru
      _
    %1065 = vsyncpa [#allocation3], 1
    %1066 = vsyncpa [#allocation6], 1
    %1067 = vsyncpa [#allocation9], 1
    %1068 = vsyncpa [#allocation4], 1

</llo_original>
